<compile_context>
chip_gen: v6e
topology: v6e:2x2x1
jax: 0.10.0
libtpu: 0.0.40
codegen_flags: <defaults>
</compile_context>

<pallas_src>
import jax
import jax.numpy as jnp
from jax.experimental import pallas as pl
from jax.experimental.pallas import tpu as pltpu


def _affine_t(w, x_t, b_col):
    """w @ x_t + b_col via unrolled VPU broadcast-multiply-accumulate.

    w:     (M, K) f32   (tiny: K in {4, 6})
    x_t:   (K, TB) f32  (lane-dense: TB is a multiple of 128)
    b_col: (M, 1) f32
    returns (M, TB) f32
    """
    k_dim = w.shape[1]
    acc = w[:, 0:1] * x_t[0:1, :] + b_col
    for k in range(1, k_dim):  # static unroll, K <= 6
        acc = acc + w[:, k : k + 1] * x_t[k : k + 1, :]
    return acc


def _mlp_kernel(xt_ref, w1_ref, b1_ref, w2_ref, b2_ref, ot_ref):
    # xt_ref: (4, TB)   w1_ref: (6, 4)  b1_ref: (6, 1)
    #                   w2_ref: (3, 6)  b2_ref: (3, 1)   ot_ref: (3, TB)
    x_t = xt_ref[...]
    h1 = jax.nn.sigmoid(_affine_t(w1_ref[...], x_t, b1_ref[...]))  # (6, TB)
    out = _affine_t(w2_ref[...], h1, b2_ref[...])                  # (3, TB)
    ot_ref[...] = out.astype(ot_ref.dtype)


def _round_up(n, m):
    return ((n + m - 1) // m) * m


def my_iris_forward(x, w1, b1, w2, b2, *, block_b=512):
    """Forward pass of MyIris.

    x:  (B, 4) float32
    w1: (6, 4), b1: (6,)   -- torch nn.Linear(4, 6) layout (out_features, in_features)
    w2: (3, 6), b2: (3,)   -- torch nn.Linear(6, 3) layout
    returns (B, 3) float32
    """
    B, in_f = x.shape
    hid = w1.shape[0]
    out_f = w2.shape[0]

    # Batch tile: multiple of 128 (lane width); cap at block_b for large B.
    tb = min(_round_up(block_b, 128), _round_up(B, 128))
    bp = _round_up(B, tb)
    grid_b = pl.cdiv(bp, tb)

    # Lane-dense transposed input, zero-padded to a whole number of tiles.
    x_t = jnp.pad(x.astype(jnp.float32).T, ((0, 0), (0, bp - B)))

    out_t = pl.pallas_call(
        _mlp_kernel,
        out_shape=jax.ShapeDtypeStruct((out_f, bp), jnp.float32),
        grid_spec=pltpu.PrefetchScalarGridSpec(
            num_scalar_prefetch=0,
            grid=(grid_b,),
            in_specs=[
                pl.BlockSpec((in_f, tb), lambda i: (0, i)),    # x^T batch tile
                pl.BlockSpec((hid, in_f), lambda i: (0, 0)),   # W1 (resident)
                pl.BlockSpec((hid, 1), lambda i: (0, 0)),      # b1 (resident)
                pl.BlockSpec((out_f, hid), lambda i: (0, 0)),  # W2 (resident)
                pl.BlockSpec((out_f, 1), lambda i: (0, 0)),    # b2 (resident)
            ],
            out_specs=pl.BlockSpec((out_f, tb), lambda i: (0, i)),
        ),
        compiler_params=pltpu.CompilerParams(
            dimension_semantics=("parallel",),
        ),
    )(
        x_t,
        w1.astype(jnp.float32),
        b1.astype(jnp.float32).reshape(hid, 1),
        w2.astype(jnp.float32),
        b2.astype(jnp.float32).reshape(out_f, 1),
    )
    # Drop padded batch columns, transpose back to (B, 3).
    return out_t[:, :B].T


def _torch_linear_init(key, fan_in, fan_out):
    """Deterministic init matching nn.Linear's default U(-1/sqrt(fan_in), +1/sqrt(fan_in)).

    Returns weight of shape (fan_out, fan_in) (torch layout) and bias (fan_out,).
    """
    kw, kb = jax.random.split(key)
    bound = 1.0 / jnp.sqrt(jnp.float32(fan_in))
    w = jax.random.uniform(kw, (fan_out, fan_in), jnp.float32, -bound, bound)
    b = jax.random.uniform(kb, (fan_out,), jnp.float32, -bound, bound)
    return w, b


if __name__ == "__main__":
    key = jax.random.PRNGKey(0)
    k_x, k_l1, k_l2 = jax.random.split(key, 3)

    # Small batch of iris-like inputs: (batch=8, features=4)
    B = 8
    x = jax.random.normal(k_x, (B, 4), dtype=jnp.float32)

    # Deterministic parameters (shapes from MyIris.__init__, torch layout):
    #   l1: Linear(4, 6)  -> w1 (6, 4), b1 (6,)
    #   l2: Linear(6, 3)  -> w2 (3, 6), b2 (3,)
    w1, b1 = _torch_linear_init(k_l1, 4, 6)
    w2, b2 = _torch_linear_init(k_l2, 6, 3)

    out = my_iris_forward(x, w1, b1, w2, b2)
    out = jax.block_until_ready(out)

    # Pure-JAX reference of the same forward pass (torch semantics).
    h1_ref = jax.nn.sigmoid(x @ w1.T + b1)
    ref = h1_ref @ w2.T + b2
    assert out.shape == (B, 3)
    assert jnp.allclose(out, ref, atol=1e-5, rtol=1e-5)

    print("KERNEL_OK")
</pallas_src>

<mosaic_0001>
module attributes {stable_mosaic.version = 11 : i64} {
  func.func @_mlp_kernel(%arg0: i32, %arg1: memref<4x128xf32, #tpu.memory_space<vmem>>, %arg2: memref<6x4xf32, #tpu.memory_space<vmem>>, %arg3: memref<6x1xf32, #tpu.memory_space<vmem>>, %arg4: memref<3x6xf32, #tpu.memory_space<vmem>>, %arg5: memref<3x1xf32, #tpu.memory_space<vmem>>, %arg6: memref<3x128xf32, #tpu.memory_space<vmem>>) attributes {dimension_semantics = [#tpu.dimension_semantics<parallel>], iteration_bounds = array<i64: 1>, scalar_prefetch = 0 : i64, scratch_operands = 0 : i64, tpu.core_type = #tpu.core_type<tc>, window_params = [{transform_indices = @transform_0, window_bounds = array<i64: 4, 128>}, {pipeline_mode = #tpu.pipeline_mode<synchronous>, transform_indices = @transform_1, window_bounds = array<i64: 6, 4>}, {pipeline_mode = #tpu.pipeline_mode<synchronous>, transform_indices = @transform_2, window_bounds = array<i64: 6, 1>}, {pipeline_mode = #tpu.pipeline_mode<synchronous>, transform_indices = @transform_3, window_bounds = array<i64: 3, 6>}, {pipeline_mode = #tpu.pipeline_mode<synchronous>, transform_indices = @transform_4, window_bounds = array<i64: 3, 1>}, {transform_indices = @transform_5, window_bounds = array<i64: 3, 128>}]} {
    %c0 = arith.constant 0 : index
    %c0_0 = arith.constant 0 : index
    %0 = vector.load %arg1[%c0, %c0_0] : memref<4x128xf32, #tpu.memory_space<vmem>>, vector<4x128xf32>
    %c0_1 = arith.constant 0 : index
    %c0_2 = arith.constant 0 : index
    %1 = vector.load %arg2[%c0_1, %c0_2] : memref<6x4xf32, #tpu.memory_space<vmem>>, vector<6x4xf32>
    %c0_3 = arith.constant 0 : index
    %c0_4 = arith.constant 0 : index
    %2 = vector.load %arg3[%c0_3, %c0_4] : memref<6x1xf32, #tpu.memory_space<vmem>>, vector<6x1xf32>
    %3 = vector.extract_strided_slice %1 {offsets = [0, 0], sizes = [6, 1], strides = [1, 1]} : vector<6x4xf32> to vector<6x1xf32>
    %4 = vector.extract_strided_slice %0 {offsets = [0, 0], sizes = [1, 128], strides = [1, 1]} : vector<4x128xf32> to vector<1x128xf32>
    %5 = vector.broadcast %3 : vector<6x1xf32> to vector<6x128xf32>
    %6 = vector.broadcast %4 : vector<1x128xf32> to vector<6x128xf32>
    %7 = arith.mulf %5, %6 : vector<6x128xf32>
    %8 = vector.broadcast %2 : vector<6x1xf32> to vector<6x128xf32>
    %9 = arith.addf %7, %8 : vector<6x128xf32>
    %10 = vector.extract_strided_slice %1 {offsets = [0, 1], sizes = [6, 1], strides = [1, 1]} : vector<6x4xf32> to vector<6x1xf32>
    %11 = vector.extract_strided_slice %0 {offsets = [1, 0], sizes = [1, 128], strides = [1, 1]} : vector<4x128xf32> to vector<1x128xf32>
    %12 = vector.broadcast %10 : vector<6x1xf32> to vector<6x128xf32>
    %13 = vector.broadcast %11 : vector<1x128xf32> to vector<6x128xf32>
    %14 = arith.mulf %12, %13 : vector<6x128xf32>
    %15 = arith.addf %9, %14 : vector<6x128xf32>
    %16 = vector.extract_strided_slice %1 {offsets = [0, 2], sizes = [6, 1], strides = [1, 1]} : vector<6x4xf32> to vector<6x1xf32>
    %17 = vector.extract_strided_slice %0 {offsets = [2, 0], sizes = [1, 128], strides = [1, 1]} : vector<4x128xf32> to vector<1x128xf32>
    %18 = vector.broadcast %16 : vector<6x1xf32> to vector<6x128xf32>
    %19 = vector.broadcast %17 : vector<1x128xf32> to vector<6x128xf32>
    %20 = arith.mulf %18, %19 : vector<6x128xf32>
    %21 = arith.addf %15, %20 : vector<6x128xf32>
    %22 = vector.extract_strided_slice %1 {offsets = [0, 3], sizes = [6, 1], strides = [1, 1]} : vector<6x4xf32> to vector<6x1xf32>
    %23 = vector.extract_strided_slice %0 {offsets = [3, 0], sizes = [1, 128], strides = [1, 1]} : vector<4x128xf32> to vector<1x128xf32>
    %24 = vector.broadcast %22 : vector<6x1xf32> to vector<6x128xf32>
    %25 = vector.broadcast %23 : vector<1x128xf32> to vector<6x128xf32>
    %26 = arith.mulf %24, %25 : vector<6x128xf32>
    %27 = arith.addf %21, %26 : vector<6x128xf32>
    %28 = arith.negf %27 : vector<6x128xf32>
    %29 = math.exp %28 : vector<6x128xf32>
    %cst = arith.constant 1.000000e+00 : f32
    %30 = vector.broadcast %cst : f32 to vector<6x128xf32>
    %31 = arith.addf %30, %29 : vector<6x128xf32>
    %32 = arith.divf %30, %31 : vector<6x128xf32>
    %c0_5 = arith.constant 0 : index
    %c0_6 = arith.constant 0 : index
    %33 = vector.load %arg4[%c0_5, %c0_6] : memref<3x6xf32, #tpu.memory_space<vmem>>, vector<3x6xf32>
    %c0_7 = arith.constant 0 : index
    %c0_8 = arith.constant 0 : index
    %34 = vector.load %arg5[%c0_7, %c0_8] : memref<3x1xf32, #tpu.memory_space<vmem>>, vector<3x1xf32>
    %35 = vector.extract_strided_slice %33 {offsets = [0, 0], sizes = [3, 1], strides = [1, 1]} : vector<3x6xf32> to vector<3x1xf32>
    %36 = vector.extract_strided_slice %32 {offsets = [0, 0], sizes = [1, 128], strides = [1, 1]} : vector<6x128xf32> to vector<1x128xf32>
    %37 = vector.broadcast %35 : vector<3x1xf32> to vector<3x128xf32>
    %38 = vector.broadcast %36 : vector<1x128xf32> to vector<3x128xf32>
    %39 = arith.mulf %37, %38 : vector<3x128xf32>
    %40 = vector.broadcast %34 : vector<3x1xf32> to vector<3x128xf32>
    %41 = arith.addf %39, %40 : vector<3x128xf32>
    %42 = vector.extract_strided_slice %33 {offsets = [0, 1], sizes = [3, 1], strides = [1, 1]} : vector<3x6xf32> to vector<3x1xf32>
    %43 = vector.extract_strided_slice %32 {offsets = [1, 0], sizes = [1, 128], strides = [1, 1]} : vector<6x128xf32> to vector<1x128xf32>
    %44 = vector.broadcast %42 : vector<3x1xf32> to vector<3x128xf32>
    %45 = vector.broadcast %43 : vector<1x128xf32> to vector<3x128xf32>
    %46 = arith.mulf %44, %45 : vector<3x128xf32>
    %47 = arith.addf %41, %46 : vector<3x128xf32>
    %48 = vector.extract_strided_slice %33 {offsets = [0, 2], sizes = [3, 1], strides = [1, 1]} : vector<3x6xf32> to vector<3x1xf32>
    %49 = vector.extract_strided_slice %32 {offsets = [2, 0], sizes = [1, 128], strides = [1, 1]} : vector<6x128xf32> to vector<1x128xf32>
    %50 = vector.broadcast %48 : vector<3x1xf32> to vector<3x128xf32>
    %51 = vector.broadcast %49 : vector<1x128xf32> to vector<3x128xf32>
    %52 = arith.mulf %50, %51 : vector<3x128xf32>
    %53 = arith.addf %47, %52 : vector<3x128xf32>
    %54 = vector.extract_strided_slice %33 {offsets = [0, 3], sizes = [3, 1], strides = [1, 1]} : vector<3x6xf32> to vector<3x1xf32>
    %55 = vector.extract_strided_slice %32 {offsets = [3, 0], sizes = [1, 128], strides = [1, 1]} : vector<6x128xf32> to vector<1x128xf32>
    %56 = vector.broadcast %54 : vector<3x1xf32> to vector<3x128xf32>
    %57 = vector.broadcast %55 : vector<1x128xf32> to vector<3x128xf32>
    %58 = arith.mulf %56, %57 : vector<3x128xf32>
    %59 = arith.addf %53, %58 : vector<3x128xf32>
    %60 = vector.extract_strided_slice %33 {offsets = [0, 4], sizes = [3, 1], strides = [1, 1]} : vector<3x6xf32> to vector<3x1xf32>
    %61 = vector.extract_strided_slice %32 {offsets = [4, 0], sizes = [1, 128], strides = [1, 1]} : vector<6x128xf32> to vector<1x128xf32>
    %62 = vector.broadcast %60 : vector<3x1xf32> to vector<3x128xf32>
    %63 = vector.broadcast %61 : vector<1x128xf32> to vector<3x128xf32>
    %64 = arith.mulf %62, %63 : vector<3x128xf32>
    %65 = arith.addf %59, %64 : vector<3x128xf32>
    %66 = vector.extract_strided_slice %33 {offsets = [0, 5], sizes = [3, 1], strides = [1, 1]} : vector<3x6xf32> to vector<3x1xf32>
    %67 = vector.extract_strided_slice %32 {offsets = [5, 0], sizes = [1, 128], strides = [1, 1]} : vector<6x128xf32> to vector<1x128xf32>
    %68 = vector.broadcast %66 : vector<3x1xf32> to vector<3x128xf32>
    %69 = vector.broadcast %67 : vector<1x128xf32> to vector<3x128xf32>
    %70 = arith.mulf %68, %69 : vector<3x128xf32>
    %71 = arith.addf %65, %70 : vector<3x128xf32>
    %c0_9 = arith.constant 0 : index
    %c0_10 = arith.constant 0 : index
    %72 = vector.load %arg6[%c0_9, %c0_10] : memref<3x128xf32, #tpu.memory_space<vmem>>, vector<3x128xf32>
    tpu.vector_store %arg6[%c0_9, %c0_10], %71 {strides = array<i32>} : memref<3x128xf32, #tpu.memory_space<vmem>>, vector<3x128xf32>,
    return
  }
  func.func @transform_0(%arg0: i32) -> (i32, i32) {
    %c0_i32 = arith.constant 0 : i32
    %c0_i32_0 = arith.constant 0 : i32
    return %c0_i32, %arg0 : i32, i32
  }
  func.func @transform_1(%arg0: i32) -> (i32, i32) {
    %c0_i32 = arith.constant 0 : i32
    %c0_i32_0 = arith.constant 0 : i32
    %c0_i32_1 = arith.constant 0 : i32
    return %c0_i32, %c0_i32_0 : i32, i32
  }
  func.func @transform_2(%arg0: i32) -> (i32, i32) {
    %c0_i32 = arith.constant 0 : i32
    %c0_i32_0 = arith.constant 0 : i32
    %c0_i32_1 = arith.constant 0 : i32
    return %c0_i32, %c0_i32_0 : i32, i32
  }
  func.func @transform_3(%arg0: i32) -> (i32, i32) {
    %c0_i32 = arith.constant 0 : i32
    %c0_i32_0 = arith.constant 0 : i32
    %c0_i32_1 = arith.constant 0 : i32
    return %c0_i32, %c0_i32_0 : i32, i32
  }
  func.func @transform_4(%arg0: i32) -> (i32, i32) {
    %c0_i32 = arith.constant 0 : i32
    %c0_i32_0 = arith.constant 0 : i32
    %c0_i32_1 = arith.constant 0 : i32
    return %c0_i32, %c0_i32_0 : i32, i32
  }
  func.func @transform_5(%arg0: i32) -> (i32, i32) {
    %c0_i32 = arith.constant 0 : i32
    %c0_i32_0 = arith.constant 0 : i32
    return %c0_i32, %arg0 : i32, i32
  }
}

</mosaic_0001>

<llo_original>
// kernel: tpu_custom_call.1
$region0: #{tpu_custom_call.1}
  #allocation0 [shape = 'u32[]', space=smem, size = 0x4, offset = 0x4, fixed_abs, tag = 'smem constant byte address 0x4 - core index']
  #allocation1 [shape = 'u32[144,128]{1,0:T(1,128)}', space=vmem, size = 0x12000, scoped, tag = 'internal scratch']
  %s0 = inlined_call_operand.vmem [shape: f32[4,128], index: 0, kind: input, shape index: {}]
  %s1 = inlined_call_operand.vmem [shape: f32[6,4], index: 1, kind: input, shape index: {}]
  %s2 = inlined_call_operand.vmem [shape: f32[6,1], index: 2, kind: input, shape index: {}]
  %s3 = inlined_call_operand.vmem [shape: f32[3,6], index: 3, kind: input, shape index: {}]
  %s4 = inlined_call_operand.vmem [shape: f32[3,1], index: 4, kind: input, shape index: {}]
  %s5 = inlined_call_operand.hbm [shape: f32[3,128], index: 5, kind: output, shape index: {}]
  %s6 = sld [smem:[#allocation0]]
  $region30: #{tpu_custom_call.1} parent=0
    _
  %s8 = ssub.s32 1, %s6
  %s9 = scalar_select 0, %s8, %s6
  $region1: #{tpu_custom_call.1} parent=0
    #allocation2 [shape = 'u8[2048]{0}', space=vmem, size = 0x800, scoped, tag = 'output window, operand 0, single buffered']
    #allocation3 [shape = 's32[1]{0}', space=sflag, size = 0x4, scoped, tag = 'scoped memory for tpu_custom_call.1']
    %10 = vsyncpa [#allocation3], 0
    // Predicated region
    $region2: #{tpu_custom_call.1} parent=1 // pred_check
      _
    $region3: #{tpu_custom_call.1} parent=1 // pred_check_branch
      %12 = sbr.rel (0) target = $region5
    $region4: #{tpu_custom_call.1} parent=1 // pred_region
      _
    $region5: #{tpu_custom_call.1} parent=1 // pred_fallthru
      _
    // Predicated region
    $region6: #{tpu_custom_call.1} parent=1 // pred_check
      _
    $region7: #{tpu_custom_call.1} parent=1 // pred_check_branch
      %14 = sbr.rel (0) target = $region9
    $region8: #{tpu_custom_call.1} parent=1 // pred_region
      _
    $region9: #{tpu_custom_call.1} parent=1 // pred_fallthru
      _
    // Predicated region
    $region10: #{tpu_custom_call.1} parent=1 // pred_check
      _
    $region11: #{tpu_custom_call.1} parent=1 // pred_check_branch
      %16 = sbr.rel (0) target = $region13
    $region12: #{tpu_custom_call.1} parent=1 // pred_region
      _
    $region13: #{tpu_custom_call.1} parent=1 // pred_fallthru
      _
    // Predicated region
    $region14: #{tpu_custom_call.1} parent=1 // pred_check
      _
    $region15: #{tpu_custom_call.1} parent=1 // pred_check_branch
      %18 = sbr.rel (0) target = $region17
    $region16: #{tpu_custom_call.1} parent=1 // pred_region
      _
    $region17: #{tpu_custom_call.1} parent=1 // pred_fallthru
      _
    // Predicated region
    $region18: #{tpu_custom_call.1} parent=1 // pred_check
      _
    $region19: #{tpu_custom_call.1} parent=1 // pred_check_branch
      %20 = sbr.rel (0) target = $region21
    $region20: #{tpu_custom_call.1} parent=1 // pred_region
      _
    $region21: #{tpu_custom_call.1} parent=1 // pred_fallthru
      _
    %v21 = vld [vmem:[%s0] sm:$0xf]
    %v22 = vld [vmem:[%s1] sm:$0x3f]
    %v23 = vld [vmem:[%s2] sm:$0x3f]
    %25 = vset.pattern.permute.xlu0 0
    %26 = vperm.xlu0 %25, %v22
    %v27 = vpop.permute.xlu0 %26
    %v29 = vlaneseq
    %v30 = vshrl.u32 %v29, 7
    %v31 = vsub.s32 0, %v30
    %v32 = vrot.slane %v21, %v31
    %v33 = vmul.f32 %v27, %v32
    %35 = vset.pattern.permute.xlu0 0
    %36 = vperm.xlu0 %35, %v23
    %v37 = vpop.permute.xlu0 %36
    %v39 = vadd.f32 %v33, %v37
    %40 = vset.pattern.permute.xlu0 1
    %41 = vperm.xlu0 %40, %v22
    %v42 = vpop.permute.xlu0 %41
    %v44 = vlaneseq
    %v45 = vshrl.u32 %v44, 7
    %v46 = vsub.s32 1, %v45
    %v47 = vrot.slane %v21, %v46
    %v48 = vmul.f32 %v42, %v47
    %v49 = vadd.f32 %v39, %v48
    %50 = vset.pattern.permute.xlu0 2
    %51 = vperm.xlu0 %50, %v22
    %v52 = vpop.permute.xlu0 %51
    %v54 = vlaneseq
    %v55 = vshrl.u32 %v54, 7
    %v56 = vsub.s32 2, %v55
    %v57 = vrot.slane %v21, %v56
    %v58 = vmul.f32 %v52, %v57
    %v59 = vadd.f32 %v49, %v58
    %60 = vset.pattern.permute.xlu0 3
    %61 = vperm.xlu0 %60, %v22
    %v62 = vpop.permute.xlu0 %61
    %v64 = vlaneseq
    %v65 = vshrl.u32 %v64, 7
    %v66 = vsub.s32 3, %v65
    %v67 = vrot.slane %v21, %v66
    %v68 = vmul.f32 %v62, %v67
    %v69 = vadd.f32 %v59, %v68
    %v70 = vxor.u32 %v69, 2147483648
    %v71 = vmul.f32 %v70, 1.442695
    %v72 = vpow.pop %v71
    %v73 = vadd.f32 %v72, 1.0
    %v74 = vrcp.pop %v73
    %v75 = vmul.f32 1.0, %v74
    %v76 = vld [vmem:[%s3] sm:$0x7]
    %v77 = vld [vmem:[%s4] sm:$0x7]
    %79 = vset.pattern.permute.xlu0 0
    %80 = vperm.xlu0 %79, %v76
    %v81 = vpop.permute.xlu0 %80
    %v83 = vlaneseq
    %v84 = vshrl.u32 %v83, 7
    %v85 = vsub.s32 0, %v84
    %v86 = vrot.slane %v75, %v85
    %v87 = vmul.f32 %v81, %v86
    %89 = vset.pattern.permute.xlu0 0
    %90 = vperm.xlu0 %89, %v77
    %v91 = vpop.permute.xlu0 %90
    %v93 = vadd.f32 %v87, %v91
    %94 = vset.pattern.permute.xlu0 1
    %95 = vperm.xlu0 %94, %v76
    %v96 = vpop.permute.xlu0 %95
    %v98 = vlaneseq
    %v99 = vshrl.u32 %v98, 7
    %v100 = vsub.s32 1, %v99
    %v101 = vrot.slane %v75, %v100
    %v102 = vmul.f32 %v96, %v101
    %v103 = vadd.f32 %v93, %v102
    %104 = vset.pattern.permute.xlu0 2
    %105 = vperm.xlu0 %104, %v76
    %v106 = vpop.permute.xlu0 %105
    %v108 = vlaneseq
    %v109 = vshrl.u32 %v108, 7
    %v110 = vsub.s32 2, %v109
    %v111 = vrot.slane %v75, %v110
    %v112 = vmul.f32 %v106, %v111
    %v113 = vadd.f32 %v103, %v112
    %114 = vset.pattern.permute.xlu0 3
    %115 = vperm.xlu0 %114, %v76
    %v116 = vpop.permute.xlu0 %115
    %v118 = vlaneseq
    %v119 = vshrl.u32 %v118, 7
    %v120 = vsub.s32 3, %v119
    %v121 = vrot.slane %v75, %v120
    %v122 = vmul.f32 %v116, %v121
    %v123 = vadd.f32 %v113, %v122
    %124 = vset.pattern.permute.xlu0 4
    %125 = vperm.xlu0 %124, %v76
    %v126 = vpop.permute.xlu0 %125
    %v128 = vlaneseq
    %v129 = vshrl.u32 %v128, 7
    %v130 = vsub.s32 4, %v129
    %v131 = vrot.slane %v75, %v130
    %v132 = vmul.f32 %v126, %v131
    %v133 = vadd.f32 %v123, %v132
    %134 = vset.pattern.permute.xlu0 5
    %135 = vperm.xlu0 %134, %v76
    %v136 = vpop.permute.xlu0 %135
    %v138 = vlaneseq
    %v139 = vshrl.u32 %v138, 7
    %v140 = vsub.s32 5, %v139
    %v141 = vrot.slane %v75, %v140
    %v142 = vmul.f32 %v136, %v141
    %v143 = vadd.f32 %v133, %v142
    %144 = vst [vmem:[#allocation2] sm:$0x7] %v143
    // Predicated region
    $region22: #{tpu_custom_call.1} parent=1 // pred_check
      _
    $region23: #{tpu_custom_call.1} parent=1 // pred_check_branch
      %146 = sbr.rel (0) target = $region25
    $region24: #{tpu_custom_call.1} parent=1 // pred_region
      %s148 = ssub.s32 64, 64
      %149 = vsyncadd [#allocation3], %s148
      %s151 = sshll.u32 [#allocation2], 4
      %s152 = int_to_ptr.vmem [resolvable:$true] %s151
      %154 = dma.vmem_to_hbm [thread:$0]  %s152, 64, %s5, [#allocation3]
    $region25: #{tpu_custom_call.1} parent=1 // pred_fallthru
      _
    // Predicated region
    $region26: #{tpu_custom_call.1} parent=1 // pred_check
      _
    $region27: #{tpu_custom_call.1} parent=1 // pred_check_branch
      %156 = sbr.rel (0) target = $region29
    $region28: #{tpu_custom_call.1} parent=1 // pred_region
      %157 = dma.done [#allocation3], 64
    $region29: #{tpu_custom_call.1} parent=1 // pred_fallthru
      _
    %158 = vsyncpa [#allocation3], 1

</llo_original>
